<compile_context>
chip_gen: v5e
topology: v5e:2x2
jax: 0.10.0
libtpu: 0.0.40
codegen_flags: <defaults>
</compile_context>

<pallas_src>
import functools

import jax
import jax.numpy as jnp
from jax.experimental import pallas as pl
from jax.experimental.pallas import tpu as pltpu


OUT_LANES = 128   # lane-dense output slab width; column 0 carries the real scalar prediction
SC_PAD = 8        # [pl, gl, 1/pl, 1/gl] padded to 8 lanes (sublane-aligned K for the MXU)


# -------------------------------------------------------------------------------------
# Kernel: one B_TILE-sized batch block per grid step.
# -------------------------------------------------------------------------------------
def predictnet_kernel(p_ref, g_ref, sc_ref, wh_ref, wo_ref, y_ref, *,
                      glen_inv, D, H, offs_h, offs_o):
    """
    p_ref : [B_TILE, plen, D] bf16   (p_rep pre-multiplied by p_mask/pl in the wrapper)
    g_ref : [B_TILE, glen, D] bf16
    sc_ref: [B_TILE, SC_PAD]  f32    ([pl, gl, 1/pl, 1/gl, 0, 0, 0, 0])
    wh_ref: packed H-wide weights    (Wp, Wg, WP1, WG1, WM1, W1s, bp, bg, b1)
    wo_ref: packed OUT_LANES-wide    (W2h, W2s, b2)
    y_ref : [B_TILE, OUT_LANES] f32  (column 0 = prediction)
    """
    f32 = jnp.float32

    def sl_h(name, n):
        o = offs_h[name]
        return wh_ref[o:o + n, :]

    def sl_o(name, n):
        o = offs_o[name]
        return wo_ref[o:o + n, :]

    # Reduce-before-matmul (exact in real arithmetic; dropout=0, no nonlinearity between
    # fc and aggregation): VPU cast + XLU sublane reduce, no per-position matmuls.
    p_sum = jnp.sum(p_ref[...].astype(f32), axis=1)                  # [B, D] masked mean (pre-fc)
    g_sum = jnp.sum(g_ref[...].astype(f32), axis=1) * glen_inv       # [B, D] plain mean (pre-fc)

    # p_fc / g_fc as dense M=B_TILE matmuls, biases added exactly once post-reduction.
    p_agg = jnp.dot(p_sum, sl_h("Wp", D), preferred_element_type=f32) + sl_h("bp", 1)
    g_agg = jnp.dot(g_sum, sl_h("Wg", D), preferred_element_type=f32) + sl_h("bg", 1)

    sc = sc_ref[...]                                                 # [B, SC_PAD]

    # pred_fc1 with W1 refolded in the wrapper (no in-kernel concat, no g-p subtract).
    h = (jnp.dot(p_agg, sl_h("WP1", H), preferred_element_type=f32)
         + jnp.dot(g_agg, sl_h("WG1", H), preferred_element_type=f32)
         + jnp.dot(p_agg * g_agg, sl_h("WM1", H), preferred_element_type=f32)
         + jnp.dot(sc, sl_h("W1s", SC_PAD), preferred_element_type=f32)
         + sl_h("b1", 1))
    h = jnp.maximum(h, 0.0)                                          # relu in f32 (VPU)

    # pred_fc2 into a lane-dense 128-wide slab -> full-vreg unmasked stores.
    y_ref[...] = (jnp.dot(h, sl_o("W2h", H), preferred_element_type=f32)
                  + jnp.dot(sc, sl_o("W2s", SC_PAD), preferred_element_type=f32)
                  + sl_o("b2", 1))


# -------------------------------------------------------------------------------------
# Wrapper-side prep (cheap, one-time XLA glue)
# -------------------------------------------------------------------------------------
def _round_up(n, m):
    return -(-n // m) * m


def _pack_rows(blocks):
    """Stack [rows, C] blocks, padding each to a multiple of 8 rows so every static slice
    in the kernel starts on a sublane-tile boundary. Returns packed array + row offsets."""
    parts, offsets, r = [], {}, 0
    for name, arr in blocks:
        n = arr.shape[0]
        n8 = _round_up(n, 8)
        parts.append(jnp.zeros((n8, arr.shape[1]), arr.dtype).at[:n].set(arr))
        offsets[name] = r
        r += n8
    return jnp.concatenate(parts, axis=0), offsets


def _pack_weights(params, D, H):
    f32 = jnp.float32
    Wp = params["Wp"].astype(f32)                       # [D, H]
    Wg = params["Wg"].astype(f32)
    bp = params["bp"].astype(f32).reshape(1, H)
    bg = params["bg"].astype(f32).reshape(1, H)
    W1 = params["W1"].astype(f32)                       # [4H+4, H]
    b1 = params["b1"].astype(f32).reshape(1, H)
    W2 = params["W2"].astype(f32)                       # [H+4, 1]
    b2 = params["b2"].astype(f32).reshape(1, 1)

    # feat @ W1 with feat = [p, g, g-p, g*p, sc4]
    #   == p@(W1_p - W1_d) + g@(W1_g + W1_d) + (g*p)@W1_m + sc4@W1_s
    WP1 = W1[0:H] - W1[2 * H:3 * H]
    WG1 = W1[H:2 * H] + W1[2 * H:3 * H]
    WM1 = W1[3 * H:4 * H]
    W1s = jnp.zeros((SC_PAD, H), f32).at[:4].set(W1[4 * H:4 * H + 4])

    wpack_h, offs_h = _pack_rows([
        ("Wp", Wp), ("Wg", Wg), ("WP1", WP1), ("WG1", WG1), ("WM1", WM1),
        ("W1s", W1s), ("bp", bp), ("bg", bg), ("b1", b1),
    ])

    # pred_fc2: pad the single output column to a 128-lane slab (unmasked stores).
    W2h = jnp.zeros((H, OUT_LANES), f32).at[:, 0].set(W2[:H, 0])
    W2s = jnp.zeros((SC_PAD, OUT_LANES), f32).at[:4, 0].set(W2[H:H + 4, 0])
    b2p = jnp.zeros((1, OUT_LANES), f32).at[0, 0].set(b2[0, 0])
    wpack_o, offs_o = _pack_rows([("W2h", W2h), ("W2s", W2s), ("b2", b2p)])
    return wpack_h, offs_h, wpack_o, offs_o


def _prep_inputs(p_rep, p_mask, g_rep, g_mask, seq_dtype):
    f32 = jnp.float32
    pmaskf = p_mask.astype(f32)
    gmaskf = g_mask.astype(f32)
    pl_cnt = pmaskf.sum(1, keepdims=True)               # [bsz, 1]
    gl_cnt = gmaskf.sum(1, keepdims=True)
    # TODO(synk): original forward divides by the raw counts (inf on an all-padded row);
    #             same behaviour kept here — add jnp.maximum(cnt, 1) if that case can occur.
    pl_inv = 1.0 / pl_cnt
    gl_inv = 1.0 / gl_cnt
    sc = jnp.concatenate(
        [pl_cnt, gl_cnt, pl_inv, gl_inv,
         jnp.zeros((p_rep.shape[0], SC_PAD - 4), f32)], axis=1)       # [bsz, SC_PAD]
    # Fold the masked-mean weights into the pattern sequence (drops a DMA stream and the
    # in-kernel [plen,1] -> 128-lane broadcast).  Done in f32, then cast to bf16 for HBM.
    p_seq = (p_rep.astype(f32) * (pmaskf * pl_inv)[..., None]).astype(seq_dtype)
    g_seq = g_rep.astype(seq_dtype)
    return p_seq, g_seq, sc


def predict_net_forward(p_rep, p_mask, g_rep, g_mask, params, *,
                        b_tile=8, seq_dtype=jnp.bfloat16):
    bsz, plen, D = p_rep.shape
    _, glen, _ = g_rep.shape
    H = params["Wp"].shape[1]

    # Batch blocking: B_TILE elements per grid step (multiple of 8 for sublane tiling).
    b_tile = max(8, _round_up(min(b_tile, bsz), 8))
    bsz_pad = _round_up(bsz, b_tile)
    if bsz_pad != bsz:
        pad = bsz_pad - bsz
        p_rep = jnp.pad(p_rep, ((0, pad), (0, 0), (0, 0)))
        g_rep = jnp.pad(g_rep, ((0, pad), (0, 0), (0, 0)))
        # padded rows are marked fully valid so 1/pl stays finite; results sliced off below
        p_mask = jnp.pad(p_mask, ((0, pad), (0, 0)), constant_values=True)
        g_mask = jnp.pad(g_mask, ((0, pad), (0, 0)), constant_values=True)

    p_seq, g_seq, sc = _prep_inputs(p_rep, p_mask, g_rep, g_mask, seq_dtype)
    wpack_h, offs_h, wpack_o, offs_o = _pack_weights(params, D, H)

    kernel = functools.partial(predictnet_kernel, glen_inv=1.0 / glen,
                               D=D, H=H, offs_h=offs_h, offs_o=offs_o)

    y_slab = pl.pallas_call(
        kernel,
        out_shape=jax.ShapeDtypeStruct((bsz_pad, OUT_LANES), jnp.float32),
        grid=(bsz_pad // b_tile,),
        in_specs=[
            pl.BlockSpec((b_tile, plen, D), lambda b: (b, 0, 0)),     # p_seq (bf16)
            pl.BlockSpec((b_tile, glen, D), lambda b: (b, 0, 0)),     # g_seq (bf16)
            pl.BlockSpec((b_tile, SC_PAD), lambda b: (b, 0)),         # scalar features
            pl.BlockSpec(wpack_h.shape, lambda b: (0, 0)),            # resident packed weights
            pl.BlockSpec(wpack_o.shape, lambda b: (0, 0)),
        ],
        out_specs=pl.BlockSpec((b_tile, OUT_LANES), lambda b: (b, 0)),
        compiler_params=pltpu.CompilerParams(
            dimension_semantics=("parallel",)),   # batch blocks shard across v7x TensorCores
    )(p_seq, g_seq, sc, wpack_h, wpack_o)

    y = y_slab[:bsz, :1]                                              # [bsz, 1]
    return y, None  # return_weights=False -> w is None


# -------------------------------------------------------------------------------------
# References
# -------------------------------------------------------------------------------------
def reference_forward(p_rep, p_mask, g_rep, g_mask, params):
    """Pure-JAX f32 mirror of PredictNet.forward (original op order)."""
    f32 = jnp.float32
    hi = jax.lax.Precision.HIGHEST
    pmaskf = p_mask.astype(f32)
    gmaskf = g_mask.astype(f32)
    pl_ = pmaskf.sum(1, keepdims=True)
    gl_ = gmaskf.sum(1, keepdims=True)
    P = jnp.dot(p_rep, params["Wp"], precision=hi) + params["bp"]     # init_pattern
    G = jnp.dot(g_rep, params["Wg"], precision=hi) + params["bg"]     # init_graph
    p_agg = (P * pmaskf[..., None]).sum(1) / pl_                      # masked mean
    g_agg = G.mean(1)                                                 # plain mean (agg_graph)
    feat = jnp.concatenate([p_agg, g_agg, g_agg - p_agg, g_agg * p_agg,
                            pl_, gl_, 1.0 / pl_, 1.0 / gl_], axis=1)
    h = jnp.maximum(jnp.dot(feat, params["W1"], precision=hi) + params["b1"], 0.0)
    y = jnp.dot(jnp.concatenate([h, pl_, gl_, 1.0 / pl_, 1.0 / gl_], axis=1),
                params["W2"], precision=hi) + params["b2"]
    return y


def reference_kernel_regime(p_rep, p_mask, g_rep, g_mask, params, *, seq_dtype=jnp.bfloat16):
    """Same math / op order / dtypes as the kernel (bf16 sequences, reduce-before-matmul,
    refolded W1) — tight numerical check."""
    f32 = jnp.float32
    hi = jax.lax.Precision.HIGHEST
    D = p_rep.shape[-1]
    glen = g_rep.shape[1]
    H = params["Wp"].shape[1]
    p_seq, g_seq, sc = _prep_inputs(p_rep, p_mask, g_rep, g_mask, seq_dtype)
    wh, offs_h, wo, offs_o = _pack_weights(params, D, H)

    def sl_h(name, n):
        o = offs_h[name]
        return wh[o:o + n]

    def sl_o(name, n):
        o = offs_o[name]
        return wo[o:o + n]

    p_sum = jnp.sum(p_seq.astype(f32), axis=1)
    g_sum = jnp.sum(g_seq.astype(f32), axis=1) * (1.0 / glen)
    p_agg = jnp.dot(p_sum, sl_h("Wp", D), precision=hi) + sl_h("bp", 1)
    g_agg = jnp.dot(g_sum, sl_h("Wg", D), precision=hi) + sl_h("bg", 1)
    h = (jnp.dot(p_agg, sl_h("WP1", H), precision=hi)
         + jnp.dot(g_agg, sl_h("WG1", H), precision=hi)
         + jnp.dot(p_agg * g_agg, sl_h("WM1", H), precision=hi)
         + jnp.dot(sc, sl_h("W1s", SC_PAD), precision=hi)
         + sl_h("b1", 1))
    h = jnp.maximum(h, 0.0)
    y = (jnp.dot(h, sl_o("W2h", H), precision=hi)
         + jnp.dot(sc, sl_o("W2s", SC_PAD), precision=hi)
         + sl_o("b2", 1))
    return y[:, :1]


def make_params(key, input_dim, hidden_dim):
    """Deterministic synthetic init (module uses normal init; pred_fc2 is zero-init in the
    original — small normal used here so the output is non-trivial)."""
    ks = jax.random.split(key, 4)
    H, D = hidden_dim, input_dim
    n = jax.random.normal
    return {
        "Wp": n(ks[0], (D, H), jnp.float32) / jnp.sqrt(D),
        "bp": jnp.zeros((1, H), jnp.float32),
        "Wg": n(ks[1], (D, H), jnp.float32) / jnp.sqrt(D),
        "bg": jnp.zeros((1, H), jnp.float32),
        "W1": n(ks[2], (4 * H + 4, H), jnp.float32) / jnp.sqrt(4 * H + 4),
        "b1": jnp.zeros((1, H), jnp.float32),
        "W2": n(ks[3], (H + 4, 1), jnp.float32) / jnp.sqrt(H + 4) * 0.1,
        "b2": jnp.zeros((1, 1), jnp.float32),
    }


if __name__ == "__main__":
    bsz, plen, glen, input_dim, hidden_dim = 16, 8, 8, 16, 32
    b_tile = 8   # 2 grid steps -> both v7x TensorCores get work
    key = jax.random.PRNGKey(0)
    kp, kg, kparam = jax.random.split(key, 3)

    p_rep = jax.random.normal(kp, (bsz, plen, input_dim), jnp.float32)
    g_rep = jax.random.normal(kg, (bsz, glen, input_dim), jnp.float32)
    # deterministic variable valid lengths (>= 1 valid position per row)
    p_lens = 1 + (jnp.arange(bsz, dtype=jnp.int32) * 3) % plen
    g_lens = 1 + (jnp.arange(bsz, dtype=jnp.int32) * 5) % glen
    p_mask = jnp.arange(plen)[None, :] < p_lens[:, None]
    g_mask = jnp.arange(glen)[None, :] < g_lens[:, None]

    params = make_params(kparam, input_dim, hidden_dim)

    y, w = predict_net_forward(p_rep, p_mask, g_rep, g_mask, params, b_tile=b_tile)
    y = jax.block_until_ready(y)

    # tight check: pure-JAX reference in the kernel's exact numeric regime
    y_mirror = reference_kernel_regime(p_rep, p_mask, g_rep, g_mask, params)
    # loose sanity check: full-f32 original-order module semantics (bf16 shifts ~1e-3)
    y_f32 = reference_forward(p_rep, p_mask, g_rep, g_mask, params)

    assert y.shape == (bsz, 1)
    assert w is None
    assert jnp.allclose(y, y_mirror, atol=2e-3, rtol=2e-3), (y, y_mirror)
    assert jnp.allclose(y, y_f32, atol=5e-2, rtol=5e-2), (y, y_f32)
    print("KERNEL_OK")
</pallas_src>

<mosaic_0001>
module attributes {stable_mosaic.version = 11 : i64} {
  func.func @predictnet_kernel(%arg0: i32, %arg1: memref<8x8x16xbf16, #tpu.memory_space<vmem>>, %arg2: memref<8x8x16xbf16, #tpu.memory_space<vmem>>, %arg3: memref<8x8xf32, #tpu.memory_space<vmem>>, %arg4: memref<160x32xf32, #tpu.memory_space<vmem>>, %arg5: memref<48x128xf32, #tpu.memory_space<vmem>>, %arg6: memref<8x128xf32, #tpu.memory_space<vmem>>) attributes {dimension_semantics = [#tpu.dimension_semantics<parallel>], iteration_bounds = array<i64: 2>, scalar_prefetch = 0 : i64, scratch_operands = 0 : i64, tpu.core_type = #tpu.core_type<tc>, window_params = [{transform_indices = @transform_0, window_bounds = array<i64: 8, 8, 16>}, {transform_indices = @transform_1, window_bounds = array<i64: 8, 8, 16>}, {transform_indices = @transform_2, window_bounds = array<i64: 8, 8>}, {pipeline_mode = #tpu.pipeline_mode<synchronous>, transform_indices = @transform_3, window_bounds = array<i64: 160, 32>}, {pipeline_mode = #tpu.pipeline_mode<synchronous>, transform_indices = @transform_4, window_bounds = array<i64: 48, 128>}, {transform_indices = @transform_5, window_bounds = array<i64: 8, 128>}]} {
    %c0 = arith.constant 0 : index
    %c0_0 = arith.constant 0 : index
    %c0_1 = arith.constant 0 : index
    %0 = vector.load %arg1[%c0, %c0_0, %c0_1] : memref<8x8x16xbf16, #tpu.memory_space<vmem>>, vector<8x8x16xbf16>
    %1 = arith.extf %0 : vector<8x8x16xbf16> to vector<8x8x16xf32>
    %cst = arith.constant dense<0.000000e+00> : vector<8x16xf32>
    %2 = vector.multi_reduction <add>, %1, %cst [1] : vector<8x8x16xf32> to vector<8x16xf32>
    %c0_2 = arith.constant 0 : index
    %c0_3 = arith.constant 0 : index
    %c0_4 = arith.constant 0 : index
    %3 = vector.load %arg2[%c0_2, %c0_3, %c0_4] : memref<8x8x16xbf16, #tpu.memory_space<vmem>>, vector<8x8x16xbf16>
    %4 = arith.extf %3 : vector<8x8x16xbf16> to vector<8x8x16xf32>
    %cst_5 = arith.constant dense<0.000000e+00> : vector<8x16xf32>
    %5 = vector.multi_reduction <add>, %4, %cst_5 [1] : vector<8x8x16xf32> to vector<8x16xf32>
    %cst_6 = arith.constant 1.250000e-01 : f32
    %6 = vector.broadcast %cst_6 : f32 to vector<8x16xf32>
    %7 = arith.mulf %5, %6 : vector<8x16xf32>
    %c0_7 = arith.constant 0 : index
    %c0_8 = arith.constant 0 : index
    %8 = vector.load %arg4[%c0_7, %c0_8] : memref<160x32xf32, #tpu.memory_space<vmem>>, vector<16x32xf32>
    %cst_9 = arith.constant dense<0.000000e+00> : vector<8x32xf32>
    %9 = tpu.matmul %2, %8, %cst_9 {dimension_numbers = #tpu.dot_dimension_numbers<[1], [0], [0], [1], [0, 0, 1, 1], [], []>} : vector<8x16xf32>, vector<16x32xf32>, vector<8x32xf32> -> vector<8x32xf32>
    %c136 = arith.constant 136 : index
    %c0_10 = arith.constant 0 : index
    %10 = vector.load %arg4[%c136, %c0_10] : memref<160x32xf32, #tpu.memory_space<vmem>>, vector<1x32xf32>
    %11 = vector.broadcast %10 : vector<1x32xf32> to vector<8x32xf32>
    %12 = arith.addf %9, %11 : vector<8x32xf32>
    %c16 = arith.constant 16 : index
    %c0_11 = arith.constant 0 : index
    %13 = vector.load %arg4[%c16, %c0_11] : memref<160x32xf32, #tpu.memory_space<vmem>>, vector<16x32xf32>
    %cst_12 = arith.constant dense<0.000000e+00> : vector<8x32xf32>
    %14 = tpu.matmul %7, %13, %cst_12 {dimension_numbers = #tpu.dot_dimension_numbers<[1], [0], [0], [1], [0, 0, 1, 1], [], []>} : vector<8x16xf32>, vector<16x32xf32>, vector<8x32xf32> -> vector<8x32xf32>
    %c144 = arith.constant 144 : index
    %c0_13 = arith.constant 0 : index
    %15 = vector.load %arg4[%c144, %c0_13] : memref<160x32xf32, #tpu.memory_space<vmem>>, vector<1x32xf32>
    %16 = vector.broadcast %15 : vector<1x32xf32> to vector<8x32xf32>
    %17 = arith.addf %14, %16 : vector<8x32xf32>
    %c0_14 = arith.constant 0 : index
    %c0_15 = arith.constant 0 : index
    %18 = vector.load %arg3[%c0_14, %c0_15] : memref<8x8xf32, #tpu.memory_space<vmem>>, vector<8x8xf32>
    %c32 = arith.constant 32 : index
    %c0_16 = arith.constant 0 : index
    %19 = vector.load %arg4[%c32, %c0_16] : memref<160x32xf32, #tpu.memory_space<vmem>>, vector<32x32xf32>
    %cst_17 = arith.constant dense<0.000000e+00> : vector<8x32xf32>
    %20 = tpu.matmul %12, %19, %cst_17 {dimension_numbers = #tpu.dot_dimension_numbers<[1], [0], [0], [1], [0, 0, 1, 1], [], []>} : vector<8x32xf32>, vector<32x32xf32>, vector<8x32xf32> -> vector<8x32xf32>
    %c64 = arith.constant 64 : index
    %c0_18 = arith.constant 0 : index
    %21 = vector.load %arg4[%c64, %c0_18] : memref<160x32xf32, #tpu.memory_space<vmem>>, vector<32x32xf32>
    %cst_19 = arith.constant dense<0.000000e+00> : vector<8x32xf32>
    %22 = tpu.matmul %17, %21, %cst_19 {dimension_numbers = #tpu.dot_dimension_numbers<[1], [0], [0], [1], [0, 0, 1, 1], [], []>} : vector<8x32xf32>, vector<32x32xf32>, vector<8x32xf32> -> vector<8x32xf32>
    %23 = arith.addf %20, %22 : vector<8x32xf32>
    %24 = arith.mulf %12, %17 : vector<8x32xf32>
    %c96 = arith.constant 96 : index
    %c0_20 = arith.constant 0 : index
    %25 = vector.load %arg4[%c96, %c0_20] : memref<160x32xf32, #tpu.memory_space<vmem>>, vector<32x32xf32>
    %cst_21 = arith.constant dense<0.000000e+00> : vector<8x32xf32>
    %26 = tpu.matmul %24, %25, %cst_21 {dimension_numbers = #tpu.dot_dimension_numbers<[1], [0], [0], [1], [0, 0, 1, 1], [], []>} : vector<8x32xf32>, vector<32x32xf32>, vector<8x32xf32> -> vector<8x32xf32>
    %27 = arith.addf %23, %26 : vector<8x32xf32>
    %c128 = arith.constant 128 : index
    %c0_22 = arith.constant 0 : index
    %28 = vector.load %arg4[%c128, %c0_22] : memref<160x32xf32, #tpu.memory_space<vmem>>, vector<8x32xf32>
    %cst_23 = arith.constant dense<0.000000e+00> : vector<8x32xf32>
    %29 = tpu.matmul %18, %28, %cst_23 {dimension_numbers = #tpu.dot_dimension_numbers<[1], [0], [0], [1], [0, 0, 1, 1], [], []>} : vector<8x8xf32>, vector<8x32xf32>, vector<8x32xf32> -> vector<8x32xf32>
    %30 = arith.addf %27, %29 : vector<8x32xf32>
    %c152 = arith.constant 152 : index
    %c0_24 = arith.constant 0 : index
    %31 = vector.load %arg4[%c152, %c0_24] : memref<160x32xf32, #tpu.memory_space<vmem>>, vector<1x32xf32>
    %32 = vector.broadcast %31 : vector<1x32xf32> to vector<8x32xf32>
    %33 = arith.addf %30, %32 : vector<8x32xf32>
    %cst_25 = arith.constant 0.000000e+00 : f32
    %34 = vector.broadcast %cst_25 : f32 to vector<8x32xf32>
    %35 = arith.maximumf %33, %34 : vector<8x32xf32>
    %c0_26 = arith.constant 0 : index
    %c0_27 = arith.constant 0 : index
    %36 = vector.load %arg5[%c0_26, %c0_27] : memref<48x128xf32, #tpu.memory_space<vmem>>, vector<32x128xf32>
    %cst_28 = arith.constant dense<0.000000e+00> : vector<8x128xf32>
    %37 = tpu.matmul %35, %36, %cst_28 {dimension_numbers = #tpu.dot_dimension_numbers<[1], [0], [0], [1], [0, 0, 1, 1], [], []>} : vector<8x32xf32>, vector<32x128xf32>, vector<8x128xf32> -> vector<8x128xf32>
    %c32_29 = arith.constant 32 : index
    %c0_30 = arith.constant 0 : index
    %38 = vector.load %arg5[%c32_29, %c0_30] : memref<48x128xf32, #tpu.memory_space<vmem>>, vector<8x128xf32>
    %cst_31 = arith.constant dense<0.000000e+00> : vector<8x128xf32>
    %39 = tpu.matmul %18, %38, %cst_31 {dimension_numbers = #tpu.dot_dimension_numbers<[1], [0], [0], [1], [0, 0, 1, 1], [], []>} : vector<8x8xf32>, vector<8x128xf32>, vector<8x128xf32> -> vector<8x128xf32>
    %40 = arith.addf %37, %39 : vector<8x128xf32>
    %c40 = arith.constant 40 : index
    %c0_32 = arith.constant 0 : index
    %41 = vector.load %arg5[%c40, %c0_32] : memref<48x128xf32, #tpu.memory_space<vmem>>, vector<1x128xf32>
    %42 = vector.broadcast %41 : vector<1x128xf32> to vector<8x128xf32>
    %43 = arith.addf %40, %42 : vector<8x128xf32>
    %c0_33 = arith.constant 0 : index
    %c0_34 = arith.constant 0 : index
    %44 = vector.load %arg6[%c0_33, %c0_34] : memref<8x128xf32, #tpu.memory_space<vmem>>, vector<8x128xf32>
    tpu.vector_store %arg6[%c0_33, %c0_34], %43 {strides = array<i32>} : memref<8x128xf32, #tpu.memory_space<vmem>>, vector<8x128xf32>,
    return
  }
  func.func @transform_0(%arg0: i32) -> (i32, i32, i32) {
    %c0_i32 = arith.constant 0 : i32
    %c0_i32_0 = arith.constant 0 : i32
    %c0_i32_1 = arith.constant 0 : i32
    return %arg0, %c0_i32, %c0_i32_0 : i32, i32, i32
  }
  func.func @transform_1(%arg0: i32) -> (i32, i32, i32) {
    %c0_i32 = arith.constant 0 : i32
    %c0_i32_0 = arith.constant 0 : i32
    %c0_i32_1 = arith.constant 0 : i32
    return %arg0, %c0_i32, %c0_i32_0 : i32, i32, i32
  }
  func.func @transform_2(%arg0: i32) -> (i32, i32) {
    %c0_i32 = arith.constant 0 : i32
    %c0_i32_0 = arith.constant 0 : i32
    return %arg0, %c0_i32 : i32, i32
  }
  func.func @transform_3(%arg0: i32) -> (i32, i32) {
    %c0_i32 = arith.constant 0 : i32
    %c0_i32_0 = arith.constant 0 : i32
    %c0_i32_1 = arith.constant 0 : i32
    return %c0_i32, %c0_i32_0 : i32, i32
  }
  func.func @transform_4(%arg0: i32) -> (i32, i32) {
    %c0_i32 = arith.constant 0 : i32
    %c0_i32_0 = arith.constant 0 : i32
    %c0_i32_1 = arith.constant 0 : i32
    return %c0_i32, %c0_i32_0 : i32, i32
  }
  func.func @transform_5(%arg0: i32) -> (i32, i32) {
    %c0_i32 = arith.constant 0 : i32
    %c0_i32_0 = arith.constant 0 : i32
    return %arg0, %c0_i32 : i32, i32
  }
}

</mosaic_0001>

<llo_original>
// kernel: tpu_custom_call.1
$region0: #{tpu_custom_call.1}
  #allocation0 [shape = 'u32[]', space=smem, size = 0x4, offset = 0x4, fixed_abs, tag = 'smem constant byte address 0x4 - core index']
  #allocation1 [shape = 'u32[72,128]{1,0:T(1,128)}', space=vmem, size = 0x9000, scoped, tag = 'internal scratch']
  %s0 = inlined_call_operand.vmem [shape: bf16[16,8,16], index: 0, kind: input, shape index: {}]
  %s1 = inlined_call_operand.vmem [shape: bf16[16,8,16], index: 1, kind: input, shape index: {}]
  %s2 = inlined_call_operand.vmem [shape: f32[16,8], index: 2, kind: input, shape index: {}]
  %s3 = inlined_call_operand.vmem [shape: f32[160,32], index: 3, kind: input, shape index: {}]
  %s4 = inlined_call_operand.vmem [shape: f32[48,128], index: 4, kind: input, shape index: {}]
  %s5 = inlined_call_operand.hbm [shape: f32[16,128], index: 5, kind: output, shape index: {}]
  %s6 = sld [smem:[#allocation0]]
  $region53: #{tpu_custom_call.1} parent=0
    _
  %s8 = ssub.s32 1, %s6
  %s9 = scalar_select 0, %s8, %s6
  $region1: #{tpu_custom_call.1} parent=0
    #allocation2 [shape = 'u8[8192]{0}', space=vmem, size = 0x2000, scoped, tag = 'output window, operand 0']
    #allocation3 [shape = 's32[2]{0}', space=sflag, size = 0x8, scoped, tag = 'scoped memory for tpu_custom_call.1']
    %10 = vsyncpa [#allocation3], 0
    %s11 = scalar_lea.sflag [#allocation3], 1
    %12 = vsyncpa %s11, 0
    loop: start=0, step=1, limit=4
    $region2: #{tpu_custom_call.1} parent=1 // loop_pre_header
      _
    $region3: #{tpu_custom_call.1} parent=1 // loop_header
      %s14 = sphi 0, %s18
      %p15 = scmp.ge.s32.totalorder %s14, 4
      %s24 = sphi 0, %s26
      %s27 = sphi 0, %s24
      %s28 = sphi 0, %s27
      %s44 = sphi 0, %s28
      %s50 = sphi 0, %s52
      %s53 = sphi 0, %s50
      %s54 = sphi 0, %s53
      %s70 = sphi 0, %s54
      %s76 = sphi 0, %s78
      %s79 = sphi 0, %s76
      %s80 = sphi 0, %s79
      %s96 = sphi 0, %s80
      %s100 = sphi 0, %s100
      %s102 = sphi 0, %s100
      %s103 = sphi 0, %s102
      %s117 = sphi 0, %s103
      %s121 = sphi 0, %s121
      %s123 = sphi 0, %s121
      %s124 = sphi 0, %s123
      %s138 = sphi 0, %s124
      %s144 = sphi 0, %s146
      %s147 = sphi 0, %s144
      %s148 = sphi 0, %s147
      %s164 = sphi 0, %s148
    $region4: #{tpu_custom_call.1} parent=1 // loop_header_branch
      %17 = sbr.rel (%p15) target = $region8
    $region5: #{tpu_custom_call.1} parent=1 // loop_body
      %s19 = ssub.s32 %s14, 1
      %s20 = ssub.s32 %s14, 2
      %s21 = sadd.s32 %s14, 1
      %s22 = ssub.s32 %s14, %s21
      %p23 = scmp.eq.s32.totalorder %s22, 0
      %s25 = sadd.s32 %s24, 1
      %s26 = scalar_select %p23, %s24, %s25
      %p29 = pneg %p23
      %p30 = scmp.eq.s32.totalorder %s14, 1
      %p31 = por %p29, %p30
      %p32 = scmp.ne.s32.totalorder %s24, %s27
      %p33 = scmp.eq.s32.totalorder %s14, 0
      %p34 = por %p32, %p33
      %p35 = scmp.ne.s32.totalorder %s24, %s27
      %p36 = scmp.eq.s32.totalorder %s19, 1
      %p37 = por %p35, %p36
      %p38 = scmp.ne.s32.totalorder %s27, %s28
      %p39 = scmp.eq.s32.totalorder %s19, 0
      %p40 = por %p38, %p39
      %p41 = scmp.ne.s32.totalorder %s27, %s28
      %p42 = scmp.eq.s32.totalorder %s20, 1
      %p43 = por %p41, %p42
      %p45 = scmp.ne.s32.totalorder %s28, %s44
      %p46 = scmp.eq.s32.totalorder %s20, 0
      %p47 = por %p45, %p46
      %s48 = ssub.s32 %s14, %s21
      %p49 = scmp.eq.s32.totalorder %s48, 0
      %s51 = sadd.s32 %s50, 1
      %s52 = scalar_select %p49, %s50, %s51
      %p55 = pneg %p49
      %p56 = scmp.eq.s32.totalorder %s14, 1
      %p57 = por %p55, %p56
      %p58 = scmp.ne.s32.totalorder %s50, %s53
      %p59 = scmp.eq.s32.totalorder %s14, 0
      %p60 = por %p58, %p59
      %p61 = scmp.ne.s32.totalorder %s50, %s53
      %p62 = scmp.eq.s32.totalorder %s19, 1
      %p63 = por %p61, %p62
      %p64 = scmp.ne.s32.totalorder %s53, %s54
      %p65 = scmp.eq.s32.totalorder %s19, 0
      %p66 = por %p64, %p65
      %p67 = scmp.ne.s32.totalorder %s53, %s54
      %p68 = scmp.eq.s32.totalorder %s20, 1
      %p69 = por %p67, %p68
      %p71 = scmp.ne.s32.totalorder %s54, %s70
      %p72 = scmp.eq.s32.totalorder %s20, 0
      %p73 = por %p71, %p72
      %s74 = ssub.s32 %s14, %s21
      %p75 = scmp.eq.s32.totalorder %s74, 0
      %s77 = sadd.s32 %s76, 1
      %s78 = scalar_select %p75, %s76, %s77
      %p81 = pneg %p75
      %p82 = scmp.eq.s32.totalorder %s14, 1
      %p83 = por %p81, %p82
      %p84 = scmp.ne.s32.totalorder %s76, %s79
      %p85 = scmp.eq.s32.totalorder %s14, 0
      %p86 = por %p84, %p85
      %p87 = scmp.ne.s32.totalorder %s76, %s79
      %p88 = scmp.eq.s32.totalorder %s19, 1
      %p89 = por %p87, %p88
      %p90 = scmp.ne.s32.totalorder %s79, %s80
      %p91 = scmp.eq.s32.totalorder %s19, 0
      %p92 = por %p90, %p91
      %p93 = scmp.ne.s32.totalorder %s79, %s80
      %p94 = scmp.eq.s32.totalorder %s20, 1
      %p95 = por %p93, %p94
      %p97 = scmp.ne.s32.totalorder %s80, %s96
      %p98 = scmp.eq.s32.totalorder %s20, 0
      %p99 = por %p97, %p98
      %s101 = sadd.s32 %s100, 1
      %p104 = scmp.eq.s32.totalorder %s14, 1
      %p105 = scmp.ne.s32.totalorder %s100, %s102
      %p106 = scmp.eq.s32.totalorder %s14, 0
      %p107 = por %p105, %p106
      %p108 = scmp.ne.s32.totalorder %s100, %s102
      %p109 = scmp.eq.s32.totalorder %s19, 1
      %p110 = por %p108, %p109
      %p111 = scmp.ne.s32.totalorder %s102, %s103
      %p112 = scmp.eq.s32.totalorder %s19, 0
      %p113 = por %p111, %p112
      %p114 = scmp.ne.s32.totalorder %s102, %s103
      %p115 = scmp.eq.s32.totalorder %s20, 1
      %p116 = por %p114, %p115
      %p118 = scmp.ne.s32.totalorder %s103, %s117
      %p119 = scmp.eq.s32.totalorder %s20, 0
      %p120 = por %p118, %p119
      %s122 = sadd.s32 %s121, 1
      %p125 = scmp.eq.s32.totalorder %s14, 1
      %p126 = scmp.ne.s32.totalorder %s121, %s123
      %p127 = scmp.eq.s32.totalorder %s14, 0
      %p128 = por %p126, %p127
      %p129 = scmp.ne.s32.totalorder %s121, %s123
      %p130 = scmp.eq.s32.totalorder %s19, 1
      %p131 = por %p129, %p130
      %p132 = scmp.ne.s32.totalorder %s123, %s124
      %p133 = scmp.eq.s32.totalorder %s19, 0
      %p134 = por %p132, %p133
      %p135 = scmp.ne.s32.totalorder %s123, %s124
      %p136 = scmp.eq.s32.totalorder %s20, 1
      %p137 = por %p135, %p136
      %p139 = scmp.ne.s32.totalorder %s124, %s138
      %p140 = scmp.eq.s32.totalorder %s20, 0
      %p141 = por %p139, %p140
      %s142 = ssub.s32 %s14, %s21
      %p143 = scmp.eq.s32.totalorder %s142, 0
      %s145 = sadd.s32 %s144, 1
      %s146 = scalar_select %p143, %s144, %s145
      %p149 = pneg %p143
      %p150 = scmp.eq.s32.totalorder %s14, 1
      %p151 = por %p149, %p150
      %p152 = scmp.ne.s32.totalorder %s144, %s147
      %p153 = scmp.eq.s32.totalorder %s14, 0
      %p154 = por %p152, %p153
      %p155 = scmp.ne.s32.totalorder %s144, %s147
      %p156 = scmp.eq.s32.totalorder %s19, 1
      %p157 = por %p155, %p156
      %p158 = scmp.ne.s32.totalorder %s147, %s148
      %p159 = scmp.eq.s32.totalorder %s19, 0
      %p160 = por %p158, %p159
      %p161 = scmp.ne.s32.totalorder %s147, %s148
      %p162 = scmp.eq.s32.totalorder %s20, 1
      %p163 = por %p161, %p162
      %p165 = scmp.ne.s32.totalorder %s148, %s164
      %p166 = scmp.eq.s32.totalorder %s20, 0
      %p167 = por %p165, %p166
      %p168 = scmp.le.s32.totalorder 1, %s14
      %p169 = scmp.lt.s32.totalorder %s14, 3
      %p170 = pnand %p168, %p169
      %p171 = pneg %p170
      // Predicated region
      $region9: #{tpu_custom_call.1} parent=5 // pred_check
        _
      $region10: #{tpu_custom_call.1} parent=5 // pred_check_branch
        %173 = sbr.rel (%p170) target = $region12
      $region11: #{tpu_custom_call.1} parent=5 // pred_region
        %s174 = ssub.s32 %s14, 1
        // Predicated region
        $region13: #{tpu_custom_call.1} parent=11 // pred_check
          %p175 = pneg %p113
        $region14: #{tpu_custom_call.1} parent=11 // pred_check_branch
          %177 = sbr.rel (%p175) target = $region16
        $region15: #{tpu_custom_call.1} parent=11 // pred_region
          _
        $region16: #{tpu_custom_call.1} parent=11 // pred_fallthru
          _
        // Predicated region
        $region17: #{tpu_custom_call.1} parent=11 // pred_check
          %p178 = pneg %p134
        $region18: #{tpu_custom_call.1} parent=11 // pred_check_branch
          %180 = sbr.rel (%p178) target = $region20
        $region19: #{tpu_custom_call.1} parent=11 // pred_region
          _
        $region20: #{tpu_custom_call.1} parent=11 // pred_fallthru
          _
      $region12: #{tpu_custom_call.1} parent=5 // pred_fallthru
        _
      %p181 = scmp.lt.s32.totalorder %s14, 2
      // Predicated region
      $region21: #{tpu_custom_call.1} parent=5 // pred_check
        %p182 = pneg %p181
      $region22: #{tpu_custom_call.1} parent=5 // pred_check_branch
        %184 = sbr.rel (%p182) target = $region24
      $region23: #{tpu_custom_call.1} parent=5 // pred_region
        // Predicated region
        $region25: #{tpu_custom_call.1} parent=23 // pred_check
          %p185 = pneg %p34
        $region26: #{tpu_custom_call.1} parent=23 // pred_check_branch
          %187 = sbr.rel (%p185) target = $region28
        $region27: #{tpu_custom_call.1} parent=23 // pred_region
          %s188 = smul.u32 8, %s14
          %p189 = scmp.lt.s32.totalorder %s188, 15
          %s190 = scalar_select %p189, %s188, 15
          %s191 = smul.addr %s190, 4
          %s192 = scalar_lea.vmem %s0, %s191
          %s193 = smul.u32 8, %s14
        $region28: #{tpu_custom_call.1} parent=23 // pred_fallthru
          _
        // Predicated region
        $region29: #{tpu_custom_call.1} parent=23 // pred_check
          %p194 = pneg %p60
        $region30: #{tpu_custom_call.1} parent=23 // pred_check_branch
          %196 = sbr.rel (%p194) target = $region32
        $region31: #{tpu_custom_call.1} parent=23 // pred_region
          %s197 = smul.u32 8, %s14
          %p198 = scmp.lt.s32.totalorder %s197, 15
          %s199 = scalar_select %p198, %s197, 15
          %s200 = smul.addr %s199, 4
          %s201 = scalar_lea.vmem %s1, %s200
          %s202 = smul.u32 8, %s14
        $region32: #{tpu_custom_call.1} parent=23 // pred_fallthru
          _
        // Predicated region
        $region33: #{tpu_custom_call.1} parent=23 // pred_check
          %p203 = pneg %p86
        $region34: #{tpu_custom_call.1} parent=23 // pred_check_branch
          %205 = sbr.rel (%p203) target = $region36
        $region35: #{tpu_custom_call.1} parent=23 // pred_region
          %p206 = scmp.lt.s32.totalorder %s14, 1
          %s207 = scalar_select %p206, %s14, 1
          %s208 = smul.addr %s207, 8
          %s209 = scalar_lea.vmem %s2, %s208
        $region36: #{tpu_custom_call.1} parent=23 // pred_fallthru
          _
      $region24: #{tpu_custom_call.1} parent=5 // pred_fallthru
        _
      %p210 = scmp.le.s32.totalorder 1, %s14
      %p211 = scmp.lt.s32.totalorder %s14, 3
      %p212 = pnand %p210, %p211
      %p213 = pneg %p212
      // Predicated region
      $region37: #{tpu_custom_call.1} parent=5 // pred_check
        _
      $region38: #{tpu_custom_call.1} parent=5 // pred_check_branch
        %215 = sbr.rel (%p212) target = $region40
      $region39: #{tpu_custom_call.1} parent=5 // pred_region
        %s216 = ssub.s32 %s14, 1
        %s217 = smul.u32 8, %s19
        %p218 = scmp.lt.s32.totalorder %s217, 15
        %s219 = scalar_select %p218, %s217, 15
        %s220 = smul.addr %s219, 4
        %s221 = scalar_lea.vmem %s0, %s220
        %p222 = pneg %p40
        %p223 = pneg %p37
        %s224 = smul.u32 8, %s19
        %p225 = scmp.lt.s32.totalorder %s224, 15
        %s226 = scalar_select %p225, %s224, 15
        %s227 = smul.addr %s226, 4
        %s228 = scalar_lea.vmem %s1, %s227
        %p229 = pneg %p66
        %p230 = pneg %p63
        %p231 = scmp.lt.s32.totalorder %s19, 1
        %s232 = scalar_select %p231, %s19, 1
        %s233 = smul.addr %s232, 8
        %s234 = scalar_lea.vmem %s2, %s233
        %p235 = pneg %p92
        %p236 = pneg %p89
        %p237 = pneg %p113
        %p238 = pneg %p110
        %p239 = pneg %p134
        %p240 = pneg %p131
        %p241 = pneg %p160
        %p242 = pneg %p157
        %s243 = sand.u32 %s147, 1
        %s244 = scalar_lea.sflag [#allocation3], %s243
        %s245 = sand.u32 %s147, 1
        %s246 = smul.addr %s245, 8
        %s247 = scalar_lea.vmem [#allocation2], %s246
        %s248 = smul.u32 8, %s19
        %p249 = scmp.lt.s32.totalorder %s248, 15
        %s250 = scalar_select %p249, %s248, 15
        %s251 = smul.addr %s250, 4
        %s252 = scalar_lea.vmem %s0, %s251
        %s253 = smul.u32 8, %s19
        %s254 = smul.u32 8, %s19
        %p255 = scmp.lt.s32.totalorder %s254, 15
        %s256 = scalar_select %p255, %s254, 15
        %s257 = smul.addr %s256, 4
        %s258 = scalar_lea.vmem %s1, %s257
        %s259 = smul.u32 8, %s19
        %p260 = scmp.lt.s32.totalorder %s19, 1
        %s261 = scalar_select %p260, %s19, 1
        %s262 = smul.addr %s261, 8
        %s263 = scalar_lea.vmem %s2, %s262
        %v264 = vld [vmem:[%s252] sm:$0xf]
        %v265 = vld [vmem:[%s252 + $0x4] sm:$0xf]
        %v266 = vld [vmem:[%s252 + $0x8] sm:$0xf]
        %v267 = vld [vmem:[%s252 + $0xc] sm:$0xf]
        %v268 = vld [vmem:[%s252 + $0x10] sm:$0xf]
        %v269 = vld [vmem:[%s252 + $0x14] sm:$0xf]
        %v270 = vld [vmem:[%s252 + $0x18] sm:$0xf]
        %v271 = vld [vmem:[%s252 + $0x1c] sm:$0xf]
        %v272 = vunpack.c.l.bf16 %v264
        %v273 = vunpack.c.l.bf16 %v265
        %v274 = vunpack.c.l.bf16 %v266
        %v275 = vunpack.c.l.bf16 %v267
        %v276 = vunpack.c.l.bf16 %v268
        %v277 = vunpack.c.l.bf16 %v269
        %v278 = vunpack.c.l.bf16 %v270
        %v279 = vunpack.c.l.bf16 %v271
        %vm280 = vcmask 130048
        %v281 = vsel %vm280, %v272, 0.0
        %v282 = vrot.slane %v281, 4
        %v283 = vadd.f32 %v281, %v282
        %v284 = vrot.slane %v283, 2
        %v285 = vadd.f32 %v283, %v284
        %v286 = vrot.slane %v285, 1
        %v287 = vadd.f32 %v285, %v286
        %v288 = vsel %vm280, %v273, 0.0
        %v289 = vrot.slane %v288, 4
        %v290 = vadd.f32 %v288, %v289
        %v291 = vrot.slane %v290, 2
        %v292 = vadd.f32 %v290, %v291
        %v293 = vrot.slane %v292, 1
        %v294 = vadd.f32 %v292, %v293
        %v295 = vsel %vm280, %v274, 0.0
        %v296 = vrot.slane %v295, 4
        %v297 = vadd.f32 %v295, %v296
        %v298 = vrot.slane %v297, 2
        %v299 = vadd.f32 %v297, %v298
        %v300 = vrot.slane %v299, 1
        %v301 = vadd.f32 %v299, %v300
        %v302 = vsel %vm280, %v275, 0.0
        %v303 = vrot.slane %v302, 4
        %v304 = vadd.f32 %v302, %v303
        %v305 = vrot.slane %v304, 2
        %v306 = vadd.f32 %v304, %v305
        %v307 = vrot.slane %v306, 1
        %v308 = vadd.f32 %v306, %v307
        %v309 = vsel %vm280, %v276, 0.0
        %v310 = vrot.slane %v309, 4
        %v311 = vadd.f32 %v309, %v310
        %v312 = vrot.slane %v311, 2
        %v313 = vadd.f32 %v311, %v312
        %v314 = vrot.slane %v313, 1
        %v315 = vadd.f32 %v313, %v314
        %v316 = vsel %vm280, %v277, 0.0
        %v317 = vrot.slane %v316, 4
        %v318 = vadd.f32 %v316, %v317
        %v319 = vrot.slane %v318, 2
        %v320 = vadd.f32 %v318, %v319
        %v321 = vrot.slane %v320, 1
        %v322 = vadd.f32 %v320, %v321
        %v323 = vsel %vm280, %v278, 0.0
        %v324 = vrot.slane %v323, 4
        %v325 = vadd.f32 %v323, %v324
        %v326 = vrot.slane %v325, 2
        %v327 = vadd.f32 %v325, %v326
        %v328 = vrot.slane %v327, 1
        %v329 = vadd.f32 %v327, %v328
        %v330 = vsel %vm280, %v279, 0.0
        %v331 = vrot.slane %v330, 4
        %v332 = vadd.f32 %v330, %v331
        %v333 = vrot.slane %v332, 2
        %v334 = vadd.f32 %v332, %v333
        %v335 = vrot.slane %v334, 1
        %v336 = vadd.f32 %v334, %v335
        %v337 = vld [vmem:[%s258] sm:$0xf]
        %v338 = vld [vmem:[%s258 + $0x4] sm:$0xf]
        %v339 = vld [vmem:[%s258 + $0x8] sm:$0xf]
        %v340 = vld [vmem:[%s258 + $0xc] sm:$0xf]
        %v341 = vld [vmem:[%s258 + $0x10] sm:$0xf]
        %v342 = vld [vmem:[%s258 + $0x14] sm:$0xf]
        %v343 = vld [vmem:[%s258 + $0x18] sm:$0xf]
        %v344 = vld [vmem:[%s258 + $0x1c] sm:$0xf]
        %v345 = vunpack.c.l.bf16 %v337
        %v346 = vunpack.c.l.bf16 %v338
        %v347 = vunpack.c.l.bf16 %v339
        %v348 = vunpack.c.l.bf16 %v340
        %v349 = vunpack.c.l.bf16 %v341
        %v350 = vunpack.c.l.bf16 %v342
        %v351 = vunpack.c.l.bf16 %v343
        %v352 = vunpack.c.l.bf16 %v344
        %v353 = vsel %vm280, %v345, 0.0
        %v354 = vrot.slane %v353, 4
        %v355 = vadd.f32 %v353, %v354
        %v356 = vrot.slane %v355, 2
        %v357 = vadd.f32 %v355, %v356
        %v358 = vrot.slane %v357, 1
        %v359 = vadd.f32 %v357, %v358
        %v360 = vsel %vm280, %v346, 0.0
        %v361 = vrot.slane %v360, 4
        %v362 = vadd.f32 %v360, %v361
        %v363 = vrot.slane %v362, 2
        %v364 = vadd.f32 %v362, %v363
        %v365 = vrot.slane %v364, 1
        %v366 = vadd.f32 %v364, %v365
        %v367 = vsel %vm280, %v347, 0.0
        %v368 = vrot.slane %v367, 4
        %v369 = vadd.f32 %v367, %v368
        %v370 = vrot.slane %v369, 2
        %v371 = vadd.f32 %v369, %v370
        %v372 = vrot.slane %v371, 1
        %v373 = vadd.f32 %v371, %v372
        %v374 = vsel %vm280, %v348, 0.0
        %v375 = vrot.slane %v374, 4
        %v376 = vadd.f32 %v374, %v375
        %v377 = vrot.slane %v376, 2
        %v378 = vadd.f32 %v376, %v377
        %v379 = vrot.slane %v378, 1
        %v380 = vadd.f32 %v378, %v379
        %v381 = vsel %vm280, %v349, 0.0
        %v382 = vrot.slane %v381, 4
        %v383 = vadd.f32 %v381, %v382
        %v384 = vrot.slane %v383, 2
        %v385 = vadd.f32 %v383, %v384
        %v386 = vrot.slane %v385, 1
        %v387 = vadd.f32 %v385, %v386
        %v388 = vsel %vm280, %v350, 0.0
        %v389 = vrot.slane %v388, 4
        %v390 = vadd.f32 %v388, %v389
        %v391 = vrot.slane %v390, 2
        %v392 = vadd.f32 %v390, %v391
        %v393 = vrot.slane %v392, 1
        %v394 = vadd.f32 %v392, %v393
        %v395 = vsel %vm280, %v351, 0.0
        %v396 = vrot.slane %v395, 4
        %v397 = vadd.f32 %v395, %v396
        %v398 = vrot.slane %v397, 2
        %v399 = vadd.f32 %v397, %v398
        %v400 = vrot.slane %v399, 1
        %v401 = vadd.f32 %v399, %v400
        %v402 = vsel %vm280, %v352, 0.0
        %v403 = vrot.slane %v402, 4
        %v404 = vadd.f32 %v402, %v403
        %v405 = vrot.slane %v404, 2
        %v406 = vadd.f32 %v404, %v405
        %v407 = vrot.slane %v406, 1
        %v408 = vadd.f32 %v406, %v407
        %v409 = vmul.f32 %v359, 0.125
        %v410 = vmul.f32 %v366, 0.125
        %v411 = vmul.f32 %v373, 0.125
        %v412 = vmul.f32 %v380, 0.125
        %v413 = vmul.f32 %v387, 0.125
        %v414 = vmul.f32 %v394, 0.125
        %v415 = vmul.f32 %v401, 0.125
        %v416 = vmul.f32 %v408, 0.125
        %v417 = vld [vmem:[%s3] sm:$0xff]
        %v418 = vld [vmem:[%s3 + $0x8] sm:$0xff]
        %v419 = vld [vmem:[%s3 + $0x88] sm:$0x1]
        %v420 = vperm.slane %v419, 0
        %vm429 = vcmask 1041409
        %v430 = vsel %vm429, %v294, %v287
        %vm431 = vcmask 1042434
        %v432 = vsel %vm431, %v301, %v430
        %vm433 = vcmask 1043459
        %v434 = vsel %vm433, %v308, %v432
        %vm435 = vcmask 1044484
        %v436 = vsel %vm435, %v315, %v434
        %vm437 = vcmask 1045509
        %v438 = vsel %vm437, %v322, %v436
        %vm439 = vcmask 1046534
        %v440 = vsel %vm439, %v329, %v438
        %vm441 = vcmask 1047559
        %v442 = vsel %vm441, %v336, %v440
        %v443 = vsel %vm280, %v442, 0
        %445 = vmatpush.msra.mxu0 0.0
        %446 = vmatpush.msra.mxu0 0.0
        %447 = vmatpush.msra.mxu0 0.0
        %448 = vmatpush.msra.mxu0 0.0
        %449 = vmatpush.msra.mxu0 0.0
        %450 = vmatpush.msra.mxu0 0.0
        %451 = vmatpush.msra.mxu0 0.0
        %452 = vmatpush.msra.mxu0 0.0
        %453 = vmatpush.msra.mxu0 0.0
        %454 = vmatpush.msra.mxu0 0.0
        %455 = vmatpush.msra.mxu0 0.0
        %456 = vmatpush.msra.mxu0 0.0
        %457 = vmatpush.msra.mxu0 0.0
        %458 = vmatpush.msra.mxu0 0.0
        %459 = vmatpush.msra.mxu0 %v418
        %460 = vmatpush.msra.mxu0 %v417
        %461 = vmatmul.f32.gmra.mxu0 %v443
        %v462 = vpop.f32.mrf.mxu0
        %v463 = vadd.f32 %v420, %v462
        %464 = vdwg.mxu0
        %v465 = vld [vmem:[%s3 + $0x10] sm:$0xff]
        %v466 = vld [vmem:[%s3 + $0x18] sm:$0xff]
        %v467 = vld [vmem:[%s3 + $0x90] sm:$0x1]
        %v468 = vperm.slane %v467, 0
        %v477 = vsel %vm429, %v410, %v409
        %v478 = vsel %vm431, %v411, %v477
        %v479 = vsel %vm433, %v412, %v478
        %v480 = vsel %vm435, %v413, %v479
        %v481 = vsel %vm437, %v414, %v480
        %v482 = vsel %vm439, %v415, %v481
        %v483 = vsel %vm441, %v416, %v482
        %v484 = vsel %vm280, %v483, 0
        %486 = vmatpush.msra.mxu0 0.0
        %487 = vmatpush.msra.mxu0 0.0
        %488 = vmatpush.msra.mxu0 0.0
        %489 = vmatpush.msra.mxu0 0.0
        %490 = vmatpush.msra.mxu0 0.0
        %491 = vmatpush.msra.mxu0 0.0
        %492 = vmatpush.msra.mxu0 0.0
        %493 = vmatpush.msra.mxu0 0.0
        %494 = vmatpush.msra.mxu0 0.0
        %495 = vmatpush.msra.mxu0 0.0
        %496 = vmatpush.msra.mxu0 0.0
        %497 = vmatpush.msra.mxu0 0.0
        %498 = vmatpush.msra.mxu0 0.0
        %499 = vmatpush.msra.mxu0 0.0
        %500 = vmatpush.msra.mxu0 %v466
        %501 = vmatpush.msra.mxu0 %v465
        %502 = vmatmul.f32.gmra.mxu0 %v484
        %v503 = vpop.f32.mrf.mxu0
        %v504 = vadd.f32 %v468, %v503
        %505 = vdwg.mxu0
        %v506 = vld [vmem:[%s263] sm:$0xff]
        %v507 = vld [vmem:[%s3 + $0x20] sm:$0xff]
        %v508 = vld [vmem:[%s3 + $0x28] sm:$0xff]
        %v509 = vld [vmem:[%s3 + $0x30] sm:$0xff]
        %v510 = vld [vmem:[%s3 + $0x38] sm:$0xff]
        %v511 = vld [vmem:[%s3 + $0x40] sm:$0xff]
        %v512 = vld [vmem:[%s3 + $0x48] sm:$0xff]
        %v513 = vld [vmem:[%s3 + $0x50] sm:$0xff]
        %v514 = vld [vmem:[%s3 + $0x58] sm:$0xff]
        %vm515 = vcmask 261120
        %v517 = vsel %vm515, %v504, 0
        %519 = vmatpush.msra.mxu0 0.0
        %520 = vmatpush.msra.mxu0 0.0
        %521 = vmatpush.msra.mxu0 0.0
        %522 = vmatpush.msra.mxu0 0.0
        %523 = vmatpush.msra.mxu0 0.0
        %524 = vmatpush.msra.mxu0 0.0
        %525 = vmatpush.msra.mxu0 0.0
        %526 = vmatpush.msra.mxu0 0.0
        %527 = vmatpush.msra.mxu0 0.0
        %528 = vmatpush.msra.mxu0 0.0
        %529 = vmatpush.msra.mxu0 0.0
        %530 = vmatpush.msra.mxu0 0.0
        %531 = vmatpush.msra.mxu0 %v514
        %532 = vmatpush.msra.mxu0 %v513
        %533 = vmatpush.msra.mxu0 %v512
        %534 = vmatpush.msra.mxu0 %v511
        %535 = vmatmul.f32.gmra.mxu0 %v517
        %v536 = vpop.f32.mrf.mxu0
        %v537 = vadd.f32 0.0, %v536
        %538 = vdwg.mxu0
        %v540 = vsel %vm515, %v463, 0
        %542 = vmatpush.msra.mxu0 0.0
        %543 = vmatpush.msra.mxu0 0.0
        %544 = vmatpush.msra.mxu0 0.0
        %545 = vmatpush.msra.mxu0 0.0
        %546 = vmatpush.msra.mxu0 0.0
        %547 = vmatpush.msra.mxu0 0.0
        %548 = vmatpush.msra.mxu0 0.0
        %549 = vmatpush.msra.mxu0 0.0
        %550 = vmatpush.msra.mxu0 0.0
        %551 = vmatpush.msra.mxu0 0.0
        %552 = vmatpush.msra.mxu0 0.0
        %553 = vmatpush.msra.mxu0 0.0
        %554 = vmatpush.msra.mxu0 %v510
        %555 = vmatpush.msra.mxu0 %v509
        %556 = vmatpush.msra.mxu0 %v508
        %557 = vmatpush.msra.mxu0 %v507
        %558 = vmatmul.f32.gmra.mxu0 %v540
        %v559 = vpop.f32.mrf.mxu0
        %v560 = vadd.f32 %v537, %v559
        %561 = vdwg.mxu0
        %v562 = vmul.f32 %v463, %v504
        %v563 = vld [vmem:[%s3 + $0x60] sm:$0xff]
        %v564 = vld [vmem:[%s3 + $0x68] sm:$0xff]
        %v565 = vld [vmem:[%s3 + $0x70] sm:$0xff]
        %v566 = vld [vmem:[%s3 + $0x78] sm:$0xff]
        %v568 = vsel %vm515, %v562, 0
        %570 = vmatpush.msra.mxu0 0.0
        %571 = vmatpush.msra.mxu0 0.0
        %572 = vmatpush.msra.mxu0 0.0
        %573 = vmatpush.msra.mxu0 0.0
        %574 = vmatpush.msra.mxu0 0.0
        %575 = vmatpush.msra.mxu0 0.0
        %576 = vmatpush.msra.mxu0 0.0
        %577 = vmatpush.msra.mxu0 0.0
        %578 = vmatpush.msra.mxu0 0.0
        %579 = vmatpush.msra.mxu0 0.0
        %580 = vmatpush.msra.mxu0 0.0
        %581 = vmatpush.msra.mxu0 0.0
        %582 = vmatpush.msra.mxu0 %v566
        %583 = vmatpush.msra.mxu0 %v565
        %584 = vmatpush.msra.mxu0 %v564
        %585 = vmatpush.msra.mxu0 %v563
        %586 = vmatmul.f32.gmra.mxu0 %v568
        %v587 = vpop.f32.mrf.mxu0
        %v588 = vadd.f32 0.0, %v587
        %589 = vdwg.mxu0
        %v590 = vadd.f32 %v560, %v588
        %v591 = vld [vmem:[%s3 + $0x80] sm:$0xff]
        %vm592 = vcmask 64512
        %v594 = vsel %vm592, %v506, 0
        %596 = vmatpush.msra.mxu0 0.0
        %597 = vmatpush.msra.mxu0 0.0
        %598 = vmatpush.msra.mxu0 0.0
        %599 = vmatpush.msra.mxu0 0.0
        %600 = vmatpush.msra.mxu0 0.0
        %601 = vmatpush.msra.mxu0 0.0
        %602 = vmatpush.msra.mxu0 0.0
        %603 = vmatpush.msra.mxu0 0.0
        %604 = vmatpush.msra.mxu0 0.0
        %605 = vmatpush.msra.mxu0 0.0
        %606 = vmatpush.msra.mxu0 0.0
        %607 = vmatpush.msra.mxu0 0.0
        %608 = vmatpush.msra.mxu0 0.0
        %609 = vmatpush.msra.mxu0 0.0
        %610 = vmatpush.msra.mxu0 0.0
        %611 = vmatpush.msra.mxu0 %v591
        %612 = vmatmul.f32.gmra.mxu0 %v594
        %v613 = vpop.f32.mrf.mxu0
        %v614 = vadd.f32 0.0, %v613
        %615 = vdwg.mxu0
        %v616 = vadd.f32 %v590, %v614
        %v617 = vld [vmem:[%s3 + $0x98] sm:$0x1]
        %v618 = vperm.slane %v617, 0
        %v619 = vadd.f32 %v616, %v618
        %v620 = vmax.f32 %v619, 0.0
        %v621 = vld [vmem:[%s4] sm:$0xff]
        %v622 = vld [vmem:[%s4 + $0x8] sm:$0xff]
        %v623 = vld [vmem:[%s4 + $0x10] sm:$0xff]
        %v624 = vld [vmem:[%s4 + $0x18] sm:$0xff]
        %v625 = vld [vmem:[%s4 + $0x20] sm:$0xff]
        %626 = vmatpush.msra.mxu0 0.0
        %627 = vmatpush.msra.mxu0 0.0
        %628 = vmatpush.msra.mxu0 0.0
        %629 = vmatpush.msra.mxu0 0.0
        %630 = vmatpush.msra.mxu0 0.0
        %631 = vmatpush.msra.mxu0 0.0
        %632 = vmatpush.msra.mxu0 0.0
        %633 = vmatpush.msra.mxu0 0.0
        %634 = vmatpush.msra.mxu0 0.0
        %635 = vmatpush.msra.mxu0 0.0
        %636 = vmatpush.msra.mxu0 0.0
        %637 = vmatpush.msra.mxu0 0.0
        %638 = vmatpush.msra.mxu0 0.0
        %639 = vmatpush.msra.mxu0 0.0
        %640 = vmatpush.msra.mxu0 0.0
        %641 = vmatpush.msra.mxu0 %v625
        %642 = vmatmul.f32.gmra.mxu0 %v594
        %v643 = vpop.f32.mrf.mxu0
        %v644 = vadd.f32 0.0, %v643
        %645 = vdwg.mxu0
        %v647 = vsel %vm515, %v620, 0
        %649 = vmatpush.msra.mxu0 0.0
        %650 = vmatpush.msra.mxu0 0.0
        %651 = vmatpush.msra.mxu0 0.0
        %652 = vmatpush.msra.mxu0 0.0
        %653 = vmatpush.msra.mxu0 0.0
        %654 = vmatpush.msra.mxu0 0.0
        %655 = vmatpush.msra.mxu0 0.0
        %656 = vmatpush.msra.mxu0 0.0
        %657 = vmatpush.msra.mxu0 0.0
        %658 = vmatpush.msra.mxu0 0.0
        %659 = vmatpush.msra.mxu0 0.0
        %660 = vmatpush.msra.mxu0 0.0
        %661 = vmatpush.msra.mxu0 %v624
        %662 = vmatpush.msra.mxu0 %v623
        %663 = vmatpush.msra.mxu0 %v622
        %664 = vmatpush.msra.mxu0 %v621
        %665 = vmatmul.f32.gmra.mxu0 %v647
        %v666 = vpop.f32.mrf.mxu0
        %v667 = vadd.f32 %v644, %v666
        %668 = vdwg.mxu0
        %v669 = vld [vmem:[%s4 + $0x28] sm:$0x1]
        %v670 = vperm.slane %v669, 0
        %v671 = vadd.f32 %v667, %v670
        %672 = vst [vmem:[%s247] sm:$0xff] %v671
        %s673 = sand.u32 %s147, 1
        %s674 = scalar_lea.sflag [#allocation3], %s673
        %s675 = sand.u32 %s147, 1
        %s676 = smul.addr %s675, 8
        %s677 = scalar_lea.vmem [#allocation2], %s676
        // Predicated region
        $region41: #{tpu_custom_call.1} parent=39 // pred_check
          %p678 = pneg %p157
        $region42: #{tpu_custom_call.1} parent=39 // pred_check_branch
          %680 = sbr.rel (%p678) target = $region44
        $region43: #{tpu_custom_call.1} parent=39 // pred_region
          %682 = vsyncadd %s674, 0
          %s683 = smul.addr %s19, 8
          %s684 = scalar_lea.hbm %s5, %s683
          %s686 = sshll.u32 %s677, 4
          %s687 = int_to_ptr.vmem [resolvable:$true] %s686
          %s688 = sshll.u32 %s684, 4
          %s689 = int_to_ptr.hbm [resolvable:$true] %s688
          %691 = dma.vmem_to_hbm [thread:$0]  %s687, 128, %s689, %s674
        $region44: #{tpu_custom_call.1} parent=39 // pred_fallthru
          _
      $region40: #{tpu_custom_call.1} parent=5 // pred_fallthru
        _
      %p692 = scmp.le.s32.totalorder 2, %s14
      // Predicated region
      $region45: #{tpu_custom_call.1} parent=5 // pred_check
        %p693 = pneg %p692
      $region46: #{tpu_custom_call.1} parent=5 // pred_check_branch
        %695 = sbr.rel (%p693) target = $region48
      $region47: #{tpu_custom_call.1} parent=5 // pred_region
        %s696 = ssub.s32 %s14, 2
        // Predicated region
        $region49: #{tpu_custom_call.1} parent=47 // pred_check
          %p697 = pneg %p163
        $region50: #{tpu_custom_call.1} parent=47 // pred_check_branch
          %699 = sbr.rel (%p697) target = $region52
        $region51: #{tpu_custom_call.1} parent=47 // pred_region
          %s700 = sand.u32 %s148, 1
          %s701 = scalar_lea.sflag [#allocation3], %s700
          %s702 = sand.u32 %s148, 1
          %s703 = smul.addr %s702, 8
          %s704 = scalar_lea.vmem [#allocation2], %s703
          %706 = dma.done %s701, 128
        $region52: #{tpu_custom_call.1} parent=47 // pred_fallthru
          _
      $region48: #{tpu_custom_call.1} parent=5 // pred_fallthru
        _
    $region6: #{tpu_custom_call.1} parent=1 // loop_footer
      %s18 = sadd.s32 1, %s14
    $region7: #{tpu_custom_call.1} parent=1 // loop_footer_branch
      %13 = sbr.rel target = $region3
    $region8: #{tpu_custom_call.1} parent=1 // loop_exit
      _
    %707 = vsyncpa [#allocation3], 1
    %s708 = scalar_lea.sflag [#allocation3], 1
    %709 = vsyncpa %s708, 1

</llo_original>
